<compile_context>
chip_gen: v7x
topology: tpu7x:2x2x1
jax: 0.10.0
libtpu: 0.0.40
codegen_flags: <defaults>
</compile_context>

<pallas_src>
import functools

import jax
import jax.numpy as jnp
from jax.experimental import pallas as pl
from jax.experimental.pallas import tpu as pltpu

_LANE = 128


def _round_up(n, m):
    return ((n + m - 1) // m) * m


def csn_kernel(x_ref, w_ref, b_ref, masks_ref, c_ref, out_ref, norms_ref):
    # embeddingnet: bf16 MXU matmul (cast fused here in VMEM), f32 accumulate,
    # f32 bias add.
    x_bf16 = x_ref[...].astype(jnp.bfloat16)
    emb = jnp.dot(x_bf16, w_ref[...],
                  preferred_element_type=jnp.float32) + b_ref[...]

    # Condition-mask gather via unrolled VPU selects over the tiny mask table
    # (exact f32; avoids an f32 MXU matmul / XLA gather round-trip).
    c_col = c_ref[...]                                    # (B, 1) int32
    n_cond = masks_ref.shape[0]
    mask_rows = jnp.zeros_like(emb)
    for j in range(n_cond):                               # static unroll, NC small
        row = masks_ref[pl.ds(j, 1), :]                   # (1, E_pad)
        mask_rows = jnp.where(c_col == j, row, mask_rows)
    # TODO(synk): if batch is ever gridded, pass `c` via scalar prefetch and
    # gather the mask row in the masks BlockSpec index_map (pl.Element)
    # instead of in-kernel selects.

    # learnedmask=True -> relu on the gathered mask rows.
    mask = jnp.maximum(mask_rows, 0.0)
    masked = emb * mask

    # Per-sample sums of squares along the (padded) embedding lanes; padded
    # lanes are exactly zero and contribute nothing.
    mask_ss = jnp.sum(mask * mask, axis=1, keepdims=True)
    emb_ss = jnp.sum(emb * emb, axis=1, keepdims=True)
    masked_ss = jnp.sum(masked * masked, axis=1, keepdims=True)

    # F.normalize(masked, dim=1): x / max(||x||, eps) == x * rsqrt(max(ss, eps^2)).
    inv = jax.lax.rsqrt(jnp.maximum(masked_ss, 1e-24))
    normalized = masked * inv

    mask_norm = jnp.sqrt(mask_ss)
    emb_norm = jnp.sqrt(emb_ss)
    masked_norm = jnp.sqrt(masked_ss)
    out_norm = masked_norm * inv      # == ||normalized|| analytically; no 2nd reduce

    # Pack the three per-sample norms into one lane-dense slab (lanes 0, 1, 2).
    lane = jax.lax.broadcasted_iota(jnp.int32, norms_ref.shape, 1)
    norms = jnp.where(lane == 0, mask_norm,
            jnp.where(lane == 1, emb_norm,
            jnp.where(lane == 2, out_norm, 0.0)))

    out_ref[...] = normalized
    norms_ref[...] = norms


def prepare_params(emb_w, emb_b, masks_weight):
    """One-time parameter preparation (hoisted out of the per-call path):
    W -> bf16, bias/masks -> f32, embedding dim zero-padded to a 128-lane
    multiple so every vreg / MXU tile / store stays lane-dense."""
    _, E = emb_w.shape
    E_pad = _round_up(max(E, _LANE), _LANE)
    w_p = jnp.pad(emb_w.astype(jnp.bfloat16), ((0, 0), (0, E_pad - E)))
    b_p = jnp.pad(emb_b.astype(jnp.float32).reshape(1, E), ((0, 0), (0, E_pad - E)))
    m_p = jnp.pad(masks_weight.astype(jnp.float32), ((0, 0), (0, E_pad - E)))
    return w_p, b_p, m_p


def conditional_simnet_forward(x, c, w_p, b_p, m_p, *, embedding_size):
    """x: (B, C, H, W) float32, c: (B,) int32 condition ids.
    w_p / b_p / m_p come from prepare_params (pre-cast, pre-padded)."""
    B = x.shape[0]
    D_in, E_pad = w_p.shape

    x_flat = x.reshape(B, -1)                      # stays f32; cast fused in-kernel
    c_col = c.astype(jnp.int32).reshape(B, 1)

    vmem = pl.BlockSpec(memory_space=pltpu.MemorySpace.VMEM)
    cost = pl.CostEstimate(
        flops=2 * B * D_in * E_pad + 10 * B * E_pad,
        transcendentals=4 * B,
        bytes_accessed=(B * D_in * 4 + D_in * E_pad * 2 + E_pad * 4
                        + m_p.size * 4 + B * 4
                        + B * E_pad * 4 + B * _LANE * 4),
    )
    normalized, norms = pl.pallas_call(
        csn_kernel,
        out_shape=(
            jax.ShapeDtypeStruct((B, E_pad), jnp.float32),   # normalized masked emb
            jax.ShapeDtypeStruct((B, _LANE), jnp.float32),   # packed per-sample norms
        ),
        in_specs=[vmem, vmem, vmem, vmem, vmem],
        out_specs=(vmem, vmem),
        cost_estimate=cost,
    )(x_flat, w_p, b_p, m_p, c_col)
    # TODO(synk): when D_in/B scale up (real conv backbone), switch to a
    # (B//TM, D_in//TK) grid with an f32 accumulator scratch and
    # dimension_semantics=("parallel", "arbitrary") — batch axis "parallel" so
    # v7x can shard it across its 2 TensorCores — and size TK per VMEM budget:
    # v7x 64 MiB physical / 32 MiB scoped (TM=128/256, TK~2-4K, set
    # vmem_limit_bytes via CompilerParams), v5e 16 MiB scoped + 128-wide MXU
    # (TM=128, TK ~ half the v6e pick).  Gridless full-VMEM blocks are optimal
    # at the current tiny shapes.

    masked_embedding = normalized[:, :embedding_size]
    return masked_embedding, norms[:, 0], norms[:, 1], norms[:, 2]


def conditional_simnet_forward_stacked(xs, cs, w_p, b_p, m_p, *, embedding_size):
    """Launch amortization: stack several forward calls (e.g. a triplet's
    anchor/positive/negative) along the batch axis and run ONE pallas_call,
    so W is DMA'd once and the fixed per-launch overhead is paid once."""
    offs, t = [], 0
    for xi in xs[:-1]:
        t += xi.shape[0]
        offs.append(t)
    emb, mn, en, on = conditional_simnet_forward(
        jnp.concatenate(xs, axis=0), jnp.concatenate(cs, axis=0),
        w_p, b_p, m_p, embedding_size=embedding_size)
    split = lambda a: jnp.split(a, offs, axis=0)
    return list(zip(split(emb), split(mn), split(en), split(on)))


if __name__ == "__main__":
    B, C, H, W = 2, 4, 16, 16
    n_conditions = 4
    embedding_size = 32
    D_in = C * H * W

    key = jax.random.PRNGKey(0)
    k_x, k_w, k_b, k_m, k_c = jax.random.split(key, 5)

    x = jax.random.normal(k_x, (B, C, H, W), dtype=jnp.float32)
    c = jax.random.randint(k_c, (B,), 0, n_conditions, dtype=jnp.int32)

    # embeddingnet parameters (deterministic synthetic linear projection).
    # TODO(synk): plug in the real backbone upstream if/when it is specified.
    emb_w = jax.random.normal(k_w, (D_in, embedding_size), dtype=jnp.float32) * 0.02
    emb_b = jax.random.normal(k_b, (embedding_size,), dtype=jnp.float32) * 0.01

    # masks: nn.Embedding(n_conditions, embedding_size).weight.data.normal_(0.9, 0.7)
    # (learnedmask=True, prein=False branch)
    masks_weight = (jax.random.normal(k_m, (n_conditions, embedding_size),
                                      dtype=jnp.float32) * 0.7 + 0.9)

    # One-time parameter cast/pad, outside the per-call path.
    w_p, b_p, m_p = prepare_params(emb_w, emb_b, masks_weight)

    fwd = jax.jit(functools.partial(conditional_simnet_forward,
                                    embedding_size=embedding_size))
    out = fwd(x, c, w_p, b_p, m_p)
    jax.block_until_ready(out)

    masked_embedding, mask_norm, emb_norm, masked_norm = out
    assert masked_embedding.shape == (B, embedding_size)
    assert mask_norm.shape == (B,) and emb_norm.shape == (B,) and masked_norm.shape == (B,)
    assert bool(jnp.all(jnp.isfinite(masked_embedding)))
    assert bool(jnp.all(jnp.isfinite(mask_norm)))
    print("KERNEL_OK")
</pallas_src>

<mosaic_0001>
module attributes {stable_mosaic.version = 11 : i64} {
  func.func @csn_kernel(%arg0: memref<2x1024xf32, #tpu.memory_space<vmem>>, %arg1: memref<1024x128xbf16, #tpu.memory_space<vmem>>, %arg2: memref<1x128xf32, #tpu.memory_space<vmem>>, %arg3: memref<4x128xf32, #tpu.memory_space<vmem>>, %arg4: memref<2x1xi32, #tpu.memory_space<vmem>>, %arg5: memref<2x128xf32, #tpu.memory_space<vmem>>, %arg6: memref<2x128xf32, #tpu.memory_space<vmem>>) attributes {dimension_semantics = [], scalar_prefetch = 0 : i64, scratch_operands = 0 : i64, tpu.core_type = #tpu.core_type<tc>} {
    %c0 = arith.constant 0 : index
    %c0_0 = arith.constant 0 : index
    %0 = vector.load %arg0[%c0, %c0_0] : memref<2x1024xf32, #tpu.memory_space<vmem>>, vector<2x1024xf32>
    %1 = arith.truncf %0 : vector<2x1024xf32> to vector<2x1024xbf16>
    %c0_1 = arith.constant 0 : index
    %c0_2 = arith.constant 0 : index
    %2 = vector.load %arg1[%c0_1, %c0_2] : memref<1024x128xbf16, #tpu.memory_space<vmem>>, vector<1024x128xbf16>
    %cst = arith.constant dense<0.000000e+00> : vector<2x128xf32>
    %3 = tpu.matmul %1, %2, %cst {dimension_numbers = #tpu.dot_dimension_numbers<[1], [0], [0], [1], [0, 0, 1, 1], [], []>} : vector<2x1024xbf16>, vector<1024x128xbf16>, vector<2x128xf32> -> vector<2x128xf32>
    %c0_3 = arith.constant 0 : index
    %c0_4 = arith.constant 0 : index
    %4 = vector.load %arg2[%c0_3, %c0_4] : memref<1x128xf32, #tpu.memory_space<vmem>>, vector<1x128xf32>
    %5 = vector.broadcast %4 : vector<1x128xf32> to vector<2x128xf32>
    %6 = arith.addf %3, %5 : vector<2x128xf32>
    %c0_5 = arith.constant 0 : index
    %c0_6 = arith.constant 0 : index
    %7 = vector.load %arg4[%c0_5, %c0_6] : memref<2x1xi32, #tpu.memory_space<vmem>>, vector<2x1xi32>
    %cst_7 = arith.constant 0.000000e+00 : f32
    %8 = vector.broadcast %cst_7 : f32 to vector<2x128xf32>
    %c0_8 = arith.constant 0 : index
    %c0_9 = arith.constant 0 : index
    %9 = vector.load %arg3[%c0_8, %c0_9] : memref<4x128xf32, #tpu.memory_space<vmem>>, vector<1x128xf32>
    %c0_i32 = arith.constant 0 : i32
    %10 = vector.broadcast %c0_i32 : i32 to vector<2x1xi32>
    %11 = arith.cmpi eq, %7, %10 : vector<2x1xi32>
    %12 = vector.shape_cast %11 : vector<2x1xi1> to vector<2x1xi1>
    %13 = vector.broadcast %12 : vector<2x1xi1> to vector<2x128xi1>
    %14 = vector.shape_cast %9 : vector<1x128xf32> to vector<1x128xf32>
    %15 = vector.broadcast %14 : vector<1x128xf32> to vector<2x128xf32>
    %16 = arith.select %13, %15, %8 : vector<2x128xi1>, vector<2x128xf32>
    %c1 = arith.constant 1 : index
    %c0_10 = arith.constant 0 : index
    %17 = vector.load %arg3[%c1, %c0_10] : memref<4x128xf32, #tpu.memory_space<vmem>>, vector<1x128xf32>
    %c1_i32 = arith.constant 1 : i32
    %18 = vector.broadcast %c1_i32 : i32 to vector<2x1xi32>
    %19 = arith.cmpi eq, %7, %18 : vector<2x1xi32>
    %20 = vector.shape_cast %19 : vector<2x1xi1> to vector<2x1xi1>
    %21 = vector.broadcast %20 : vector<2x1xi1> to vector<2x128xi1>
    %22 = vector.shape_cast %17 : vector<1x128xf32> to vector<1x128xf32>
    %23 = vector.broadcast %22 : vector<1x128xf32> to vector<2x128xf32>
    %24 = arith.select %21, %23, %16 : vector<2x128xi1>, vector<2x128xf32>
    %c2 = arith.constant 2 : index
    %c0_11 = arith.constant 0 : index
    %25 = vector.load %arg3[%c2, %c0_11] : memref<4x128xf32, #tpu.memory_space<vmem>>, vector<1x128xf32>
    %c2_i32 = arith.constant 2 : i32
    %26 = vector.broadcast %c2_i32 : i32 to vector<2x1xi32>
    %27 = arith.cmpi eq, %7, %26 : vector<2x1xi32>
    %28 = vector.shape_cast %27 : vector<2x1xi1> to vector<2x1xi1>
    %29 = vector.broadcast %28 : vector<2x1xi1> to vector<2x128xi1>
    %30 = vector.shape_cast %25 : vector<1x128xf32> to vector<1x128xf32>
    %31 = vector.broadcast %30 : vector<1x128xf32> to vector<2x128xf32>
    %32 = arith.select %29, %31, %24 : vector<2x128xi1>, vector<2x128xf32>
    %c3 = arith.constant 3 : index
    %c0_12 = arith.constant 0 : index
    %33 = vector.load %arg3[%c3, %c0_12] : memref<4x128xf32, #tpu.memory_space<vmem>>, vector<1x128xf32>
    %c3_i32 = arith.constant 3 : i32
    %34 = vector.broadcast %c3_i32 : i32 to vector<2x1xi32>
    %35 = arith.cmpi eq, %7, %34 : vector<2x1xi32>
    %36 = vector.shape_cast %35 : vector<2x1xi1> to vector<2x1xi1>
    %37 = vector.broadcast %36 : vector<2x1xi1> to vector<2x128xi1>
    %38 = vector.shape_cast %33 : vector<1x128xf32> to vector<1x128xf32>
    %39 = vector.broadcast %38 : vector<1x128xf32> to vector<2x128xf32>
    %40 = arith.select %37, %39, %32 : vector<2x128xi1>, vector<2x128xf32>
    %cst_13 = arith.constant 0.000000e+00 : f32
    %41 = vector.broadcast %cst_13 : f32 to vector<2x128xf32>
    %42 = arith.maximumf %40, %41 : vector<2x128xf32>
    %43 = arith.mulf %6, %42 : vector<2x128xf32>
    %44 = arith.mulf %42, %42 : vector<2x128xf32>
    %cst_14 = arith.constant dense<0.000000e+00> : vector<2xf32>
    %45 = vector.multi_reduction <add>, %44, %cst_14 [1] : vector<2x128xf32> to vector<2xf32>
    %46 = vector.shape_cast %45 : vector<2xf32> to vector<2x1xf32>
    %47 = arith.mulf %6, %6 : vector<2x128xf32>
    %cst_15 = arith.constant dense<0.000000e+00> : vector<2xf32>
    %48 = vector.multi_reduction <add>, %47, %cst_15 [1] : vector<2x128xf32> to vector<2xf32>
    %49 = vector.shape_cast %48 : vector<2xf32> to vector<2x1xf32>
    %50 = arith.mulf %43, %43 : vector<2x128xf32>
    %cst_16 = arith.constant dense<0.000000e+00> : vector<2xf32>
    %51 = vector.multi_reduction <add>, %50, %cst_16 [1] : vector<2x128xf32> to vector<2xf32>
    %52 = vector.shape_cast %51 : vector<2xf32> to vector<2x1xf32>
    %cst_17 = arith.constant 1.000000e-24 : f32
    %53 = vector.broadcast %cst_17 : f32 to vector<2x1xf32>
    %54 = arith.maximumf %52, %53 : vector<2x1xf32>
    %55 = math.rsqrt %54 : vector<2x1xf32>
    %56 = vector.broadcast %55 : vector<2x1xf32> to vector<2x128xf32>
    %57 = arith.mulf %43, %56 : vector<2x128xf32>
    %58 = math.sqrt %46 : vector<2x1xf32>
    %59 = math.sqrt %49 : vector<2x1xf32>
    %60 = math.sqrt %52 : vector<2x1xf32>
    %61 = arith.mulf %60, %55 : vector<2x1xf32>
    %62 = tpu.iota {dimensions = array<i32: 1>} : vector<2x128xi32>
    %c0_i32_18 = arith.constant 0 : i32
    %63 = vector.broadcast %c0_i32_18 : i32 to vector<2x128xi32>
    %64 = arith.cmpi eq, %62, %63 : vector<2x128xi32>
    %c1_i32_19 = arith.constant 1 : i32
    %65 = vector.broadcast %c1_i32_19 : i32 to vector<2x128xi32>
    %66 = arith.cmpi eq, %62, %65 : vector<2x128xi32>
    %c2_i32_20 = arith.constant 2 : i32
    %67 = vector.broadcast %c2_i32_20 : i32 to vector<2x128xi32>
    %68 = arith.cmpi eq, %62, %67 : vector<2x128xi32>
    %cst_21 = arith.constant 0.000000e+00 : f32
    %69 = vector.shape_cast %61 : vector<2x1xf32> to vector<2x1xf32>
    %70 = vector.broadcast %69 : vector<2x1xf32> to vector<2x128xf32>
    %71 = vector.broadcast %cst_21 : f32 to vector<2x128xf32>
    %72 = arith.select %68, %70, %71 : vector<2x128xi1>, vector<2x128xf32>
    %73 = vector.shape_cast %59 : vector<2x1xf32> to vector<2x1xf32>
    %74 = vector.broadcast %73 : vector<2x1xf32> to vector<2x128xf32>
    %75 = arith.select %66, %74, %72 : vector<2x128xi1>, vector<2x128xf32>
    %76 = vector.shape_cast %58 : vector<2x1xf32> to vector<2x1xf32>
    %77 = vector.broadcast %76 : vector<2x1xf32> to vector<2x128xf32>
    %78 = arith.select %64, %77, %75 : vector<2x128xi1>, vector<2x128xf32>
    %c0_22 = arith.constant 0 : index
    %c0_23 = arith.constant 0 : index
    %79 = vector.load %arg5[%c0_22, %c0_23] : memref<2x128xf32, #tpu.memory_space<vmem>>, vector<2x128xf32>
    tpu.vector_store %arg5[%c0_22, %c0_23], %57 {strides = array<i32>} : memref<2x128xf32, #tpu.memory_space<vmem>>, vector<2x128xf32>,
    %c0_24 = arith.constant 0 : index
    %c0_25 = arith.constant 0 : index
    %80 = vector.load %arg6[%c0_24, %c0_25] : memref<2x128xf32, #tpu.memory_space<vmem>>, vector<2x128xf32>
    tpu.vector_store %arg6[%c0_24, %c0_25], %78 {strides = array<i32>} : memref<2x128xf32, #tpu.memory_space<vmem>>, vector<2x128xf32>,
    return
  }
}

</mosaic_0001>

<llo_original>
// kernel: conditional_simnet_forward.1
$region0: #{conditional_simnet_forward.1}
  #allocation0 [shape = 'u32[]', space=smem, size = 0x4, offset = 0x4, fixed_abs, tag = 'smem constant byte address 0x4 - core index']
  #allocation1 [shape = 'u32[144,128]{1,0:T(1,128)}', space=vmem, size = 0x12000, scoped, tag = 'internal scratch']
  %s0 = inlined_call_operand.vmem [shape: f32[2,1024], index: 0, kind: input, shape index: {}]
  %s1 = inlined_call_operand.hbm [shape: bf16[1024,128], index: 1, kind: input, shape index: {}]
  %s2 = inlined_call_operand.vmem [shape: f32[1,128], index: 2, kind: input, shape index: {}]
  %s3 = inlined_call_operand.vmem [shape: f32[4,128], index: 3, kind: input, shape index: {}]
  %s4 = inlined_call_operand.vmem [shape: s32[2,1], index: 4, kind: input, shape index: {}]
  %s5 = inlined_call_operand.hbm [shape: f32[2,128], index: 5, kind: output, shape index: {0}]
  %s6 = inlined_call_operand.vmem [shape: f32[2,128], index: 6, kind: output, shape index: {1}]
  %7 = xla_tuple %s5, %s6
  %s8 = sld [smem:[#allocation0]]
  $region42: #{conditional_simnet_forward.1} parent=0
    _
  %s10 = ssub.s32 1, %s8
  %s11 = scalar_select 0, %s10, %s8
  $region1: #{conditional_simnet_forward.1} parent=0
    #allocation2 [shape = 'u8[262144]{0}', space=vmem, size = 0x40000, scoped, tag = 'input window, operand 1, single buffered']
    #allocation3 [shape = 's32[1]{0}', space=sflag, size = 0x4, scoped, tag = 'scoped memory for conditional_simnet_forward.1']
    #allocation4 [shape = 's32[1]{0}', space=sflag, size = 0x4, scoped, tag = 'scoped memory for conditional_simnet_forward.1']
    #allocation5 [shape = 'u8[1024]{0}', space=vmem, size = 0x400, scoped, tag = 'output window, operand 0, single buffered']
    %12 = vsyncpa [#allocation3], 0
    %13 = vsyncpa [#allocation4], 0
    // Predicated region
    $region2: #{conditional_simnet_forward.1} parent=1 // pred_check
      _
    $region3: #{conditional_simnet_forward.1} parent=1 // pred_check_branch
      %15 = sbr.rel (0) target = $region5
    $region4: #{conditional_simnet_forward.1} parent=1 // pred_region
      _
    $region5: #{conditional_simnet_forward.1} parent=1 // pred_fallthru
      _
    // Predicated region
    $region6: #{conditional_simnet_forward.1} parent=1 // pred_check
      _
    $region7: #{conditional_simnet_forward.1} parent=1 // pred_check_branch
      %17 = sbr.rel (0) target = $region9
    $region8: #{conditional_simnet_forward.1} parent=1 // pred_region
      %s19 = ssub.s32 8192, 8192
      %20 = vsyncadd [#allocation3], %s19
      %s21 = sshll.u32 [#allocation2], 4
      %s22 = int_to_ptr.vmem [resolvable:$true] %s21
      %27 = dma.hbm_to_vmem [thread:$0]  %s1, 8192, %s22, [#allocation3], 64, 64, 4
    $region9: #{conditional_simnet_forward.1} parent=1 // pred_fallthru
      _
    // Predicated region
    $region10: #{conditional_simnet_forward.1} parent=1 // pred_check
      _
    $region11: #{conditional_simnet_forward.1} parent=1 // pred_check_branch
      %29 = sbr.rel (0) target = $region13
    $region12: #{conditional_simnet_forward.1} parent=1 // pred_region
      _
    $region13: #{conditional_simnet_forward.1} parent=1 // pred_fallthru
      _
    // Predicated region
    $region14: #{conditional_simnet_forward.1} parent=1 // pred_check
      _
    $region15: #{conditional_simnet_forward.1} parent=1 // pred_check_branch
      %31 = sbr.rel (0) target = $region17
    $region16: #{conditional_simnet_forward.1} parent=1 // pred_region
      _
    $region17: #{conditional_simnet_forward.1} parent=1 // pred_fallthru
      _
    // Predicated region
    $region18: #{conditional_simnet_forward.1} parent=1 // pred_check
      _
    $region19: #{conditional_simnet_forward.1} parent=1 // pred_check_branch
      %33 = sbr.rel (0) target = $region21
    $region20: #{conditional_simnet_forward.1} parent=1 // pred_region
      _
    $region21: #{conditional_simnet_forward.1} parent=1 // pred_fallthru
      _
    // Predicated region
    $region22: #{conditional_simnet_forward.1} parent=1 // pred_check
      _
    $region23: #{conditional_simnet_forward.1} parent=1 // pred_check_branch
      %35 = sbr.rel (0) target = $region25
    $region24: #{conditional_simnet_forward.1} parent=1 // pred_region
      %36 = dma.done [#allocation3], 8192
    $region25: #{conditional_simnet_forward.1} parent=1 // pred_fallthru
      _
    %v38 = vld [vmem:[%s0] sm:$0xff]
    %v39 = vld [vmem:[%s0 + $0x8] sm:$0xff]
    %v42 = vcombine.high %v38, %v38
    %v44 = vunpack.c.l.s4 1983009808
    %v45 = vunpack.c.0.s8 %v44
    %v46 = vlaneseq
    %v47 = vshrl.u32 %v46, 7
    %v48 = vsub.s32 %v45, %v47
    %v49 = vrot.slane %v38, %v48
    %v51 = vunpack.c.l.s4 1983009808
    %v52 = vunpack.c.0.s8 %v51
    %v53 = vlaneseq
    %v54 = vshrl.u32 %v53, 7
    %v55 = vsub.s32 %v52, %v54
    %v56 = vrot.slane %v42, %v55
    %v57 = vcombine.high %v49, %v49
    %v58 = vcombine.high %v56, %v56
    %v59 = vcombine.high %v39, %v39
    %v61 = vunpack.c.l.s4 1983009808
    %v62 = vunpack.c.0.s8 %v61
    %v63 = vlaneseq
    %v64 = vshrl.u32 %v63, 7
    %v65 = vsub.s32 %v62, %v64
    %v66 = vrot.slane %v39, %v65
    %v68 = vunpack.c.l.s4 1983009808
    %v69 = vunpack.c.0.s8 %v68
    %v70 = vlaneseq
    %v71 = vshrl.u32 %v70, 7
    %v72 = vsub.s32 %v69, %v71
    %v73 = vrot.slane %v59, %v72
    %v74 = vcombine.high %v66, %v66
    %v75 = vcombine.high %v73, %v73
    %v84 = vpack.c.bf16 %v49, %v49
    %v85 = vpack.c.bf16 %v57, %v57
    %v86 = vpack.c.bf16 %v56, %v56
    %v87 = vpack.c.bf16 %v58, %v58
    %v88 = vpack.c.bf16 %v66, %v66
    %v89 = vpack.c.bf16 %v74, %v74
    %v90 = vpack.c.bf16 %v73, %v73
    %v91 = vpack.c.bf16 %v75, %v75
    %v92 = vld [vmem:[#allocation2] sm:$0xf]
    %v93 = vld [vmem:[#allocation2 + $0x4] sm:$0xf]
    %v94 = vld [vmem:[#allocation2 + $0x8] sm:$0xf]
    %v95 = vld [vmem:[#allocation2 + $0xc] sm:$0xf]
    %v96 = vld [vmem:[#allocation2 + $0x10] sm:$0xf]
    %v97 = vld [vmem:[#allocation2 + $0x14] sm:$0xf]
    %v98 = vld [vmem:[#allocation2 + $0x18] sm:$0xf]
    %v99 = vld [vmem:[#allocation2 + $0x1c] sm:$0xf]
    %v100 = vld [vmem:[#allocation2 + $0x20] sm:$0xf]
    %v101 = vld [vmem:[#allocation2 + $0x24] sm:$0xf]
    %v102 = vld [vmem:[#allocation2 + $0x28] sm:$0xf]
    %v103 = vld [vmem:[#allocation2 + $0x2c] sm:$0xf]
    %v104 = vld [vmem:[#allocation2 + $0x30] sm:$0xf]
    %v105 = vld [vmem:[#allocation2 + $0x34] sm:$0xf]
    %v106 = vld [vmem:[#allocation2 + $0x38] sm:$0xf]
    %v107 = vld [vmem:[#allocation2 + $0x3c] sm:$0xf]
    %v108 = vld [vmem:[#allocation2 + $0x40] sm:$0xf]
    %v109 = vld [vmem:[#allocation2 + $0x44] sm:$0xf]
    %v110 = vld [vmem:[#allocation2 + $0x48] sm:$0xf]
    %v111 = vld [vmem:[#allocation2 + $0x4c] sm:$0xf]
    %v112 = vld [vmem:[#allocation2 + $0x50] sm:$0xf]
    %v113 = vld [vmem:[#allocation2 + $0x54] sm:$0xf]
    %v114 = vld [vmem:[#allocation2 + $0x58] sm:$0xf]
    %v115 = vld [vmem:[#allocation2 + $0x5c] sm:$0xf]
    %v116 = vld [vmem:[#allocation2 + $0x60] sm:$0xf]
    %v117 = vld [vmem:[#allocation2 + $0x64] sm:$0xf]
    %v118 = vld [vmem:[#allocation2 + $0x68] sm:$0xf]
    %v119 = vld [vmem:[#allocation2 + $0x6c] sm:$0xf]
    %v120 = vld [vmem:[#allocation2 + $0x70] sm:$0xf]
    %v121 = vld [vmem:[#allocation2 + $0x74] sm:$0xf]
    %v122 = vld [vmem:[#allocation2 + $0x78] sm:$0xf]
    %v123 = vld [vmem:[#allocation2 + $0x7c] sm:$0xf]
    %v124 = vld [vmem:[#allocation2 + $0x80] sm:$0xf]
    %v125 = vld [vmem:[#allocation2 + $0x84] sm:$0xf]
    %v126 = vld [vmem:[#allocation2 + $0x88] sm:$0xf]
    %v127 = vld [vmem:[#allocation2 + $0x8c] sm:$0xf]
    %v128 = vld [vmem:[#allocation2 + $0x90] sm:$0xf]
    %v129 = vld [vmem:[#allocation2 + $0x94] sm:$0xf]
    %v130 = vld [vmem:[#allocation2 + $0x98] sm:$0xf]
    %v131 = vld [vmem:[#allocation2 + $0x9c] sm:$0xf]
    %v132 = vld [vmem:[#allocation2 + $0xa0] sm:$0xf]
    %v133 = vld [vmem:[#allocation2 + $0xa4] sm:$0xf]
    %v134 = vld [vmem:[#allocation2 + $0xa8] sm:$0xf]
    %v135 = vld [vmem:[#allocation2 + $0xac] sm:$0xf]
    %v136 = vld [vmem:[#allocation2 + $0xb0] sm:$0xf]
    %v137 = vld [vmem:[#allocation2 + $0xb4] sm:$0xf]
    %v138 = vld [vmem:[#allocation2 + $0xb8] sm:$0xf]
    %v139 = vld [vmem:[#allocation2 + $0xbc] sm:$0xf]
    %v140 = vld [vmem:[#allocation2 + $0xc0] sm:$0xf]
    %v141 = vld [vmem:[#allocation2 + $0xc4] sm:$0xf]
    %v142 = vld [vmem:[#allocation2 + $0xc8] sm:$0xf]
    %v143 = vld [vmem:[#allocation2 + $0xcc] sm:$0xf]
    %v144 = vld [vmem:[#allocation2 + $0xd0] sm:$0xf]
    %v145 = vld [vmem:[#allocation2 + $0xd4] sm:$0xf]
    %v146 = vld [vmem:[#allocation2 + $0xd8] sm:$0xf]
    %v147 = vld [vmem:[#allocation2 + $0xdc] sm:$0xf]
    %v148 = vld [vmem:[#allocation2 + $0xe0] sm:$0xf]
    %v149 = vld [vmem:[#allocation2 + $0xe4] sm:$0xf]
    %v150 = vld [vmem:[#allocation2 + $0xe8] sm:$0xf]
    %v151 = vld [vmem:[#allocation2 + $0xec] sm:$0xf]
    %v152 = vld [vmem:[#allocation2 + $0xf0] sm:$0xf]
    %v153 = vld [vmem:[#allocation2 + $0xf4] sm:$0xf]
    %v154 = vld [vmem:[#allocation2 + $0xf8] sm:$0xf]
    %v155 = vld [vmem:[#allocation2 + $0xfc] sm:$0xf]
    %v156 = vld [vmem:[#allocation2 + $0x100] sm:$0xf]
    %v157 = vld [vmem:[#allocation2 + $0x104] sm:$0xf]
    %v158 = vld [vmem:[#allocation2 + $0x108] sm:$0xf]
    %v159 = vld [vmem:[#allocation2 + $0x10c] sm:$0xf]
    %v160 = vld [vmem:[#allocation2 + $0x110] sm:$0xf]
    %v161 = vld [vmem:[#allocation2 + $0x114] sm:$0xf]
    %v162 = vld [vmem:[#allocation2 + $0x118] sm:$0xf]
    %v163 = vld [vmem:[#allocation2 + $0x11c] sm:$0xf]
    %v164 = vld [vmem:[#allocation2 + $0x120] sm:$0xf]
    %v165 = vld [vmem:[#allocation2 + $0x124] sm:$0xf]
    %v166 = vld [vmem:[#allocation2 + $0x128] sm:$0xf]
    %v167 = vld [vmem:[#allocation2 + $0x12c] sm:$0xf]
    %v168 = vld [vmem:[#allocation2 + $0x130] sm:$0xf]
    %v169 = vld [vmem:[#allocation2 + $0x134] sm:$0xf]
    %v170 = vld [vmem:[#allocation2 + $0x138] sm:$0xf]
    %v171 = vld [vmem:[#allocation2 + $0x13c] sm:$0xf]
    %v172 = vld [vmem:[#allocation2 + $0x140] sm:$0xf]
    %v173 = vld [vmem:[#allocation2 + $0x144] sm:$0xf]
    %v174 = vld [vmem:[#allocation2 + $0x148] sm:$0xf]
    %v175 = vld [vmem:[#allocation2 + $0x14c] sm:$0xf]
    %v176 = vld [vmem:[#allocation2 + $0x150] sm:$0xf]
    %v177 = vld [vmem:[#allocation2 + $0x154] sm:$0xf]
    %v178 = vld [vmem:[#allocation2 + $0x158] sm:$0xf]
    %v179 = vld [vmem:[#allocation2 + $0x15c] sm:$0xf]
    %v180 = vld [vmem:[#allocation2 + $0x160] sm:$0xf]
    %v181 = vld [vmem:[#allocation2 + $0x164] sm:$0xf]
    %v182 = vld [vmem:[#allocation2 + $0x168] sm:$0xf]
    %v183 = vld [vmem:[#allocation2 + $0x16c] sm:$0xf]
    %v184 = vld [vmem:[#allocation2 + $0x170] sm:$0xf]
    %v185 = vld [vmem:[#allocation2 + $0x174] sm:$0xf]
    %v186 = vld [vmem:[#allocation2 + $0x178] sm:$0xf]
    %v187 = vld [vmem:[#allocation2 + $0x17c] sm:$0xf]
    %v188 = vld [vmem:[#allocation2 + $0x180] sm:$0xf]
    %v189 = vld [vmem:[#allocation2 + $0x184] sm:$0xf]
    %v190 = vld [vmem:[#allocation2 + $0x188] sm:$0xf]
    %v191 = vld [vmem:[#allocation2 + $0x18c] sm:$0xf]
    %v192 = vld [vmem:[#allocation2 + $0x190] sm:$0xf]
    %v193 = vld [vmem:[#allocation2 + $0x194] sm:$0xf]
    %v194 = vld [vmem:[#allocation2 + $0x198] sm:$0xf]
    %v195 = vld [vmem:[#allocation2 + $0x19c] sm:$0xf]
    %v196 = vld [vmem:[#allocation2 + $0x1a0] sm:$0xf]
    %v197 = vld [vmem:[#allocation2 + $0x1a4] sm:$0xf]
    %v198 = vld [vmem:[#allocation2 + $0x1a8] sm:$0xf]
    %v199 = vld [vmem:[#allocation2 + $0x1ac] sm:$0xf]
    %v200 = vld [vmem:[#allocation2 + $0x1b0] sm:$0xf]
    %v201 = vld [vmem:[#allocation2 + $0x1b4] sm:$0xf]
    %v202 = vld [vmem:[#allocation2 + $0x1b8] sm:$0xf]
    %v203 = vld [vmem:[#allocation2 + $0x1bc] sm:$0xf]
    %v204 = vld [vmem:[#allocation2 + $0x1c0] sm:$0xf]
    %v205 = vld [vmem:[#allocation2 + $0x1c4] sm:$0xf]
    %v206 = vld [vmem:[#allocation2 + $0x1c8] sm:$0xf]
    %v207 = vld [vmem:[#allocation2 + $0x1cc] sm:$0xf]
    %v208 = vld [vmem:[#allocation2 + $0x1d0] sm:$0xf]
    %v209 = vld [vmem:[#allocation2 + $0x1d4] sm:$0xf]
    %v210 = vld [vmem:[#allocation2 + $0x1d8] sm:$0xf]
    %v211 = vld [vmem:[#allocation2 + $0x1dc] sm:$0xf]
    %v212 = vld [vmem:[#allocation2 + $0x1e0] sm:$0xf]
    %v213 = vld [vmem:[#allocation2 + $0x1e4] sm:$0xf]
    %v214 = vld [vmem:[#allocation2 + $0x1e8] sm:$0xf]
    %v215 = vld [vmem:[#allocation2 + $0x1ec] sm:$0xf]
    %v216 = vld [vmem:[#allocation2 + $0x1f0] sm:$0xf]
    %v217 = vld [vmem:[#allocation2 + $0x1f4] sm:$0xf]
    %v218 = vld [vmem:[#allocation2 + $0x1f8] sm:$0xf]
    %v219 = vld [vmem:[#allocation2 + $0x1fc] sm:$0xf]
    %v220 = vld [vmem:[%s2] sm:$0x1]
    %v222 = vlaneseq
    %v223 = vshrl.u32 %v222, 7
    %v224 = vsub.s32 0, %v223
    %v225 = vrot.slane %v220, %v224
    %v355 = vunpack.c.l.b16 %v92
    %v356 = vunpack.c.l.b16 %v93
    %v357 = vunpack.c.l.b16 %v94
    %v358 = vunpack.c.l.b16 %v95
    %v359 = vunpack.c.l.b16 %v96
    %v360 = vunpack.c.l.b16 %v97
    %v361 = vunpack.c.l.b16 %v98
    %v362 = vunpack.c.l.b16 %v99
    %v363 = vunpack.c.l.b16 %v100
    %v364 = vunpack.c.l.b16 %v101
    %v365 = vunpack.c.l.b16 %v102
    %v366 = vunpack.c.l.b16 %v103
    %v367 = vunpack.c.l.b16 %v104
    %v368 = vunpack.c.l.b16 %v105
    %v369 = vunpack.c.l.b16 %v106
    %v370 = vunpack.c.l.b16 %v107
    %v371 = vunpack.c.l.b16 %v108
    %v372 = vunpack.c.l.b16 %v109
    %v373 = vunpack.c.l.b16 %v110
    %v374 = vunpack.c.l.b16 %v111
    %v375 = vunpack.c.l.b16 %v112
    %v376 = vunpack.c.l.b16 %v113
    %v377 = vunpack.c.l.b16 %v114
    %v378 = vunpack.c.l.b16 %v115
    %v379 = vunpack.c.l.b16 %v116
    %v380 = vunpack.c.l.b16 %v117
    %v381 = vunpack.c.l.b16 %v118
    %v382 = vunpack.c.l.b16 %v119
    %v383 = vunpack.c.l.b16 %v120
    %v384 = vunpack.c.l.b16 %v121
    %v385 = vunpack.c.l.b16 %v122
    %v386 = vunpack.c.l.b16 %v123
    %v387 = vunpack.c.l.b16 %v124
    %v388 = vunpack.c.l.b16 %v125
    %v389 = vunpack.c.l.b16 %v126
    %v390 = vunpack.c.l.b16 %v127
    %v391 = vunpack.c.l.b16 %v128
    %v392 = vunpack.c.l.b16 %v129
    %v393 = vunpack.c.l.b16 %v130
    %v394 = vunpack.c.l.b16 %v131
    %v395 = vunpack.c.l.b16 %v132
    %v396 = vunpack.c.l.b16 %v133
    %v397 = vunpack.c.l.b16 %v134
    %v398 = vunpack.c.l.b16 %v135
    %v399 = vunpack.c.l.b16 %v136
    %v400 = vunpack.c.l.b16 %v137
    %v401 = vunpack.c.l.b16 %v138
    %v402 = vunpack.c.l.b16 %v139
    %v403 = vunpack.c.l.b16 %v140
    %v404 = vunpack.c.l.b16 %v141
    %v405 = vunpack.c.l.b16 %v142
    %v406 = vunpack.c.l.b16 %v143
    %v407 = vunpack.c.l.b16 %v144
    %v408 = vunpack.c.l.b16 %v145
    %v409 = vunpack.c.l.b16 %v146
    %v410 = vunpack.c.l.b16 %v147
    %v411 = vunpack.c.l.b16 %v148
    %v412 = vunpack.c.l.b16 %v149
    %v413 = vunpack.c.l.b16 %v150
    %v414 = vunpack.c.l.b16 %v151
    %v415 = vunpack.c.l.b16 %v152
    %v416 = vunpack.c.l.b16 %v153
    %v417 = vunpack.c.l.b16 %v154
    %v418 = vunpack.c.l.b16 %v155
    %v419 = vunpack.c.l.b16 %v156
    %v420 = vunpack.c.l.b16 %v157
    %v421 = vunpack.c.l.b16 %v158
    %v422 = vunpack.c.l.b16 %v159
    %v423 = vunpack.c.l.b16 %v160
    %v424 = vunpack.c.l.b16 %v161
    %v425 = vunpack.c.l.b16 %v162
    %v426 = vunpack.c.l.b16 %v163
    %v427 = vunpack.c.l.b16 %v164
    %v428 = vunpack.c.l.b16 %v165
    %v429 = vunpack.c.l.b16 %v166
    %v430 = vunpack.c.l.b16 %v167
    %v431 = vunpack.c.l.b16 %v168
    %v432 = vunpack.c.l.b16 %v169
    %v433 = vunpack.c.l.b16 %v170
    %v434 = vunpack.c.l.b16 %v171
    %v435 = vunpack.c.l.b16 %v172
    %v436 = vunpack.c.l.b16 %v173
    %v437 = vunpack.c.l.b16 %v174
    %v438 = vunpack.c.l.b16 %v175
    %v439 = vunpack.c.l.b16 %v176
    %v440 = vunpack.c.l.b16 %v177
    %v441 = vunpack.c.l.b16 %v178
    %v442 = vunpack.c.l.b16 %v179
    %v443 = vunpack.c.l.b16 %v180
    %v444 = vunpack.c.l.b16 %v181
    %v445 = vunpack.c.l.b16 %v182
    %v446 = vunpack.c.l.b16 %v183
    %v447 = vunpack.c.l.b16 %v184
    %v448 = vunpack.c.l.b16 %v185
    %v449 = vunpack.c.l.b16 %v186
    %v450 = vunpack.c.l.b16 %v187
    %v451 = vunpack.c.l.b16 %v188
    %v452 = vunpack.c.l.b16 %v189
    %v453 = vunpack.c.l.b16 %v190
    %v454 = vunpack.c.l.b16 %v191
    %v455 = vunpack.c.l.b16 %v192
    %v456 = vunpack.c.l.b16 %v193
    %v457 = vunpack.c.l.b16 %v194
    %v458 = vunpack.c.l.b16 %v195
    %v459 = vunpack.c.l.b16 %v196
    %v460 = vunpack.c.l.b16 %v197
    %v461 = vunpack.c.l.b16 %v198
    %v462 = vunpack.c.l.b16 %v199
    %v463 = vunpack.c.l.b16 %v200
    %v464 = vunpack.c.l.b16 %v201
    %v465 = vunpack.c.l.b16 %v202
    %v466 = vunpack.c.l.b16 %v203
    %v467 = vunpack.c.l.b16 %v204
    %v468 = vunpack.c.l.b16 %v205
    %v469 = vunpack.c.l.b16 %v206
    %v470 = vunpack.c.l.b16 %v207
    %v471 = vunpack.c.l.b16 %v208
    %v472 = vunpack.c.l.b16 %v209
    %v473 = vunpack.c.l.b16 %v210
    %v474 = vunpack.c.l.b16 %v211
    %v475 = vunpack.c.l.b16 %v212
    %v476 = vunpack.c.l.b16 %v213
    %v477 = vunpack.c.l.b16 %v214
    %v478 = vunpack.c.l.b16 %v215
    %v479 = vunpack.c.l.b16 %v216
    %v480 = vunpack.c.l.b16 %v217
    %v481 = vunpack.c.l.b16 %v218
    %v482 = vunpack.c.l.b16 %v219
    %v483 = vpack.c.b16 %v356, %v355
    %v484 = vpack.c.b16 %v358, %v357
    %v485 = vpack.c.b16 %v360, %v359
    %v486 = vpack.c.b16 %v362, %v361
    %v487 = vpack.c.b16 %v364, %v363
    %v488 = vpack.c.b16 %v366, %v365
    %v489 = vpack.c.b16 %v368, %v367
    %v490 = vpack.c.b16 %v370, %v369
    %v491 = vpack.c.b16 %v372, %v371
    %v492 = vpack.c.b16 %v374, %v373
    %v493 = vpack.c.b16 %v376, %v375
    %v494 = vpack.c.b16 %v378, %v377
    %v495 = vpack.c.b16 %v380, %v379
    %v496 = vpack.c.b16 %v382, %v381
    %v497 = vpack.c.b16 %v384, %v383
    %v498 = vpack.c.b16 %v386, %v385
    %v499 = vpack.c.b16 %v388, %v387
    %v500 = vpack.c.b16 %v390, %v389
    %v501 = vpack.c.b16 %v392, %v391
    %v502 = vpack.c.b16 %v394, %v393
    %v503 = vpack.c.b16 %v396, %v395
    %v504 = vpack.c.b16 %v398, %v397
    %v505 = vpack.c.b16 %v400, %v399
    %v506 = vpack.c.b16 %v402, %v401
    %v507 = vpack.c.b16 %v404, %v403
    %v508 = vpack.c.b16 %v406, %v405
    %v509 = vpack.c.b16 %v408, %v407
    %v510 = vpack.c.b16 %v410, %v409
    %v511 = vpack.c.b16 %v412, %v411
    %v512 = vpack.c.b16 %v414, %v413
    %v513 = vpack.c.b16 %v416, %v415
    %v514 = vpack.c.b16 %v418, %v417
    %v515 = vpack.c.b16 %v420, %v419
    %v516 = vpack.c.b16 %v422, %v421
    %v517 = vpack.c.b16 %v424, %v423
    %v518 = vpack.c.b16 %v426, %v425
    %v519 = vpack.c.b16 %v428, %v427
    %v520 = vpack.c.b16 %v430, %v429
    %v521 = vpack.c.b16 %v432, %v431
    %v522 = vpack.c.b16 %v434, %v433
    %v523 = vpack.c.b16 %v436, %v435
    %v524 = vpack.c.b16 %v438, %v437
    %v525 = vpack.c.b16 %v440, %v439
    %v526 = vpack.c.b16 %v442, %v441
    %v527 = vpack.c.b16 %v444, %v443
    %v528 = vpack.c.b16 %v446, %v445
    %v529 = vpack.c.b16 %v448, %v447
    %v530 = vpack.c.b16 %v450, %v449
    %v531 = vpack.c.b16 %v452, %v451
    %v532 = vpack.c.b16 %v454, %v453
    %v533 = vpack.c.b16 %v456, %v455
    %v534 = vpack.c.b16 %v458, %v457
    %v535 = vpack.c.b16 %v460, %v459
    %v536 = vpack.c.b16 %v462, %v461
    %v537 = vpack.c.b16 %v464, %v463
    %v538 = vpack.c.b16 %v466, %v465
    %v539 = vpack.c.b16 %v468, %v467
    %v540 = vpack.c.b16 %v470, %v469
    %v541 = vpack.c.b16 %v472, %v471
    %v542 = vpack.c.b16 %v474, %v473
    %v543 = vpack.c.b16 %v476, %v475
    %v544 = vpack.c.b16 %v478, %v477
    %v545 = vpack.c.b16 %v480, %v479
    %v546 = vpack.c.b16 %v482, %v481
    %611 = vmatprep.subr.bf16.mxu0 0
    %612 = vmatpush1.bf16.msra.mxu0 %v483
    %613 = vmatprep.subr.bf16.mxu0 0
    %614 = vmatpush1.bf16.msra.mxu0 %v484
    %615 = vmatprep.subr.bf16.mxu0 0
    %616 = vmatpush1.bf16.msra.mxu0 %v485
    %617 = vmatprep.subr.bf16.mxu0 0
    %618 = vmatpush1.bf16.msra.mxu0 %v486
    %619 = vmatprep.subr.bf16.mxu0 0
    %620 = vmatpush1.bf16.msra.mxu0 %v487
    %621 = vmatprep.subr.bf16.mxu0 0
    %622 = vmatpush1.bf16.msra.mxu0 %v488
    %623 = vmatprep.subr.bf16.mxu0 0
    %624 = vmatpush1.bf16.msra.mxu0 %v489
    %625 = vmatprep.subr.bf16.mxu0 0
    %626 = vmatpush1.bf16.msra.mxu0 %v490
    %627 = vmatprep.subr.bf16.mxu0 0
    %628 = vmatpush1.bf16.msra.mxu0 %v491
    %629 = vmatprep.subr.bf16.mxu0 0
    %630 = vmatpush1.bf16.msra.mxu0 %v492
    %631 = vmatprep.subr.bf16.mxu0 0
    %632 = vmatpush1.bf16.msra.mxu0 %v493
    %633 = vmatprep.subr.bf16.mxu0 0
    %634 = vmatpush1.bf16.msra.mxu0 %v494
    %635 = vmatprep.subr.bf16.mxu0 0
    %636 = vmatpush1.bf16.msra.mxu0 %v495
    %637 = vmatprep.subr.bf16.mxu0 0
    %638 = vmatpush1.bf16.msra.mxu0 %v496
    %639 = vmatprep.subr.bf16.mxu0 0
    %640 = vmatpush1.bf16.msra.mxu0 %v497
    %641 = vmatprep.subr.bf16.mxu0 0
    %642 = vmatpush1.bf16.msra.mxu0 %v498
    %643 = vmatprep.mubr.bf16.mxu0 %v85
    %644 = vmatmul.mubr.bf16.gmra.mrb[0].mxu0 %v84
    %v645 = vpop.f32.mrb[0].mxu0
    %v646 = vadd.f32 %v225, %v645
    %v647 = vpop.f32.mrb[0].mxu0
    %v648 = vpop.f32.mrb[0].mxu0
    %v649 = vpop.f32.mrb[0].mxu0
    %650 = vdwg.mxu0
    %651 = vmatprep.subr.bf16.mxu0 0
    %652 = vmatpush1.bf16.msra.mxu0 %v499
    %653 = vmatprep.subr.bf16.mxu0 0
    %654 = vmatpush1.bf16.msra.mxu0 %v500
    %655 = vmatprep.subr.bf16.mxu0 0
    %656 = vmatpush1.bf16.msra.mxu0 %v501
    %657 = vmatprep.subr.bf16.mxu0 0
    %658 = vmatpush1.bf16.msra.mxu0 %v502
    %659 = vmatprep.subr.bf16.mxu0 0
    %660 = vmatpush1.bf16.msra.mxu0 %v503
    %661 = vmatprep.subr.bf16.mxu0 0
    %662 = vmatpush1.bf16.msra.mxu0 %v504
    %663 = vmatprep.subr.bf16.mxu0 0
    %664 = vmatpush1.bf16.msra.mxu0 %v505
    %665 = vmatprep.subr.bf16.mxu0 0
    %666 = vmatpush1.bf16.msra.mxu0 %v506
    %667 = vmatprep.subr.bf16.mxu0 0
    %668 = vmatpush1.bf16.msra.mxu0 %v507
    %669 = vmatprep.subr.bf16.mxu0 0
    %670 = vmatpush1.bf16.msra.mxu0 %v508
    %671 = vmatprep.subr.bf16.mxu0 0
    %672 = vmatpush1.bf16.msra.mxu0 %v509
    %673 = vmatprep.subr.bf16.mxu0 0
    %674 = vmatpush1.bf16.msra.mxu0 %v510
    %675 = vmatprep.subr.bf16.mxu0 0
    %676 = vmatpush1.bf16.msra.mxu0 %v511
    %677 = vmatprep.subr.bf16.mxu0 0
    %678 = vmatpush1.bf16.msra.mxu0 %v512
    %679 = vmatprep.subr.bf16.mxu0 0
    %680 = vmatpush1.bf16.msra.mxu0 %v513
    %681 = vmatprep.subr.bf16.mxu0 0
    %682 = vmatpush1.bf16.msra.mxu0 %v514
    %683 = vmatprep.mubr.bf16.mxu0 %v87
    %684 = vmatmul.mubr.bf16.gmra.mrb[0].mxu0 %v86
    %v685 = vpop.f32.mrb[0].mxu0
    %v686 = vadd.f32 %v646, %v685
    %v687 = vpop.f32.mrb[0].mxu0
    %v688 = vpop.f32.mrb[0].mxu0
    %v689 = vpop.f32.mrb[0].mxu0
    %690 = vdwg.mxu0
    %691 = vmatprep.subr.bf16.mxu0 0
    %692 = vmatpush1.bf16.msra.mxu0 %v515
    %693 = vmatprep.subr.bf16.mxu0 0
    %694 = vmatpush1.bf16.msra.mxu0 %v516
    %695 = vmatprep.subr.bf16.mxu0 0
    %696 = vmatpush1.bf16.msra.mxu0 %v517
    %697 = vmatprep.subr.bf16.mxu0 0
    %698 = vmatpush1.bf16.msra.mxu0 %v518
    %699 = vmatprep.subr.bf16.mxu0 0
    %700 = vmatpush1.bf16.msra.mxu0 %v519
    %701 = vmatprep.subr.bf16.mxu0 0
    %702 = vmatpush1.bf16.msra.mxu0 %v520
    %703 = vmatprep.subr.bf16.mxu0 0
    %704 = vmatpush1.bf16.msra.mxu0 %v521
    %705 = vmatprep.subr.bf16.mxu0 0
    %706 = vmatpush1.bf16.msra.mxu0 %v522
    %707 = vmatprep.subr.bf16.mxu0 0
    %708 = vmatpush1.bf16.msra.mxu0 %v523
    %709 = vmatprep.subr.bf16.mxu0 0
    %710 = vmatpush1.bf16.msra.mxu0 %v524
    %711 = vmatprep.subr.bf16.mxu0 0
    %712 = vmatpush1.bf16.msra.mxu0 %v525
    %713 = vmatprep.subr.bf16.mxu0 0
    %714 = vmatpush1.bf16.msra.mxu0 %v526
    %715 = vmatprep.subr.bf16.mxu0 0
    %716 = vmatpush1.bf16.msra.mxu0 %v527
    %717 = vmatprep.subr.bf16.mxu0 0
    %718 = vmatpush1.bf16.msra.mxu0 %v528
    %719 = vmatprep.subr.bf16.mxu0 0
    %720 = vmatpush1.bf16.msra.mxu0 %v529
    %721 = vmatprep.subr.bf16.mxu0 0
    %722 = vmatpush1.bf16.msra.mxu0 %v530
    %723 = vmatprep.mubr.bf16.mxu0 %v89
    %724 = vmatmul.mubr.bf16.gmra.mrb[0].mxu0 %v88
    %v725 = vpop.f32.mrb[0].mxu0
    %v726 = vadd.f32 %v686, %v725
    %v727 = vpop.f32.mrb[0].mxu0
    %v728 = vpop.f32.mrb[0].mxu0
    %v729 = vpop.f32.mrb[0].mxu0
    %730 = vdwg.mxu0
    %731 = vmatprep.subr.bf16.mxu0 0
    %732 = vmatpush1.bf16.msra.mxu0 %v531
    %733 = vmatprep.subr.bf16.mxu0 0
    %734 = vmatpush1.bf16.msra.mxu0 %v532
    %735 = vmatprep.subr.bf16.mxu0 0
    %736 = vmatpush1.bf16.msra.mxu0 %v533
    %737 = vmatprep.subr.bf16.mxu0 0
    %738 = vmatpush1.bf16.msra.mxu0 %v534
    %739 = vmatprep.subr.bf16.mxu0 0
    %740 = vmatpush1.bf16.msra.mxu0 %v535
    %741 = vmatprep.subr.bf16.mxu0 0
    %742 = vmatpush1.bf16.msra.mxu0 %v536
    %743 = vmatprep.subr.bf16.mxu0 0
    %744 = vmatpush1.bf16.msra.mxu0 %v537
    %745 = vmatprep.subr.bf16.mxu0 0
    %746 = vmatpush1.bf16.msra.mxu0 %v538
    %747 = vmatprep.subr.bf16.mxu0 0
    %748 = vmatpush1.bf16.msra.mxu0 %v539
    %749 = vmatprep.subr.bf16.mxu0 0
    %750 = vmatpush1.bf16.msra.mxu0 %v540
    %751 = vmatprep.subr.bf16.mxu0 0
    %752 = vmatpush1.bf16.msra.mxu0 %v541
    %753 = vmatprep.subr.bf16.mxu0 0
    %754 = vmatpush1.bf16.msra.mxu0 %v542
    %755 = vmatprep.subr.bf16.mxu0 0
    %756 = vmatpush1.bf16.msra.mxu0 %v543
    %757 = vmatprep.subr.bf16.mxu0 0
    %758 = vmatpush1.bf16.msra.mxu0 %v544
    %759 = vmatprep.subr.bf16.mxu0 0
    %760 = vmatpush1.bf16.msra.mxu0 %v545
    %761 = vmatprep.subr.bf16.mxu0 0
    %762 = vmatpush1.bf16.msra.mxu0 %v546
    %763 = vmatprep.mubr.bf16.mxu0 %v91
    %764 = vmatmul.mubr.bf16.gmra.mrb[0].mxu0 %v90
    %v765 = vpop.f32.mrb[0].mxu0
    %v766 = vadd.f32 %v726, %v765
    %v767 = vpop.f32.mrb[0].mxu0
    %v768 = vpop.f32.mrb[0].mxu0
    %v769 = vpop.f32.mrb[0].mxu0
    %770 = vdwg.mxu0
    %v771 = vld [vmem:[%s4] sm:$0x3]
    %v772 = vld [vmem:[%s3] sm:$0x1]
    %vm773 = vcmp.eq.s32.totalorder %v771, 0
    %v774 = vsel %vm773, 1, 0
    %775 = vset.pattern.permute.xlu0 0
    %776 = vperm.xlu0 %775, %v774
    %v777 = vpop.permute.xlu0 %776
    %vm778 = vcmp.eq.s32.totalorder %v777, 1
    %v779 = vlaneseq
    %v780 = vshrl.u32 %v779, 7
    %v781 = vsub.s32 0, %v780
    %v782 = vrot.slane %v772, %v781
    %v783 = vsel %vm778, %v782, 0.0
    %v784 = vld [vmem:[%s3 + $0x1] sm:$0x1]
    %vm785 = vcmp.eq.s32.totalorder %v771, 1
    %v786 = vsel %vm785, 1, 0
    %787 = vset.pattern.permute.xlu0 0
    %788 = vperm.xlu0 %787, %v786
    %v789 = vpop.permute.xlu0 %788
    %vm790 = vcmp.eq.s32.totalorder %v789, 1
    %v791 = vlaneseq
    %v792 = vshrl.u32 %v791, 7
    %v793 = vsub.s32 0, %v792
    %v794 = vrot.slane %v784, %v793
    %v795 = vsel %vm790, %v794, %v783
    %v796 = vld [vmem:[%s3 + $0x2] sm:$0x1]
    %vm797 = vcmp.eq.s32.totalorder %v771, 2
    %v798 = vsel %vm797, 1, 0
    %799 = vset.pattern.permute.xlu0 0
    %800 = vperm.xlu0 %799, %v798
    %v801 = vpop.permute.xlu0 %800
    %vm802 = vcmp.eq.s32.totalorder %v801, 1
    %v803 = vlaneseq
    %v804 = vshrl.u32 %v803, 7
    %v805 = vsub.s32 0, %v804
    %v806 = vrot.slane %v796, %v805
    %v807 = vsel %vm802, %v806, %v795
    %v808 = vld [vmem:[%s3 + $0x3] sm:$0x1]
    %vm809 = vcmp.eq.s32.totalorder %v771, 3
    %v810 = vsel %vm809, 1, 0
    %811 = vset.pattern.permute.xlu0 0
    %812 = vperm.xlu0 %811, %v810
    %v813 = vpop.permute.xlu0 %812
    %vm814 = vcmp.eq.s32.totalorder %v813, 1
    %v815 = vlaneseq
    %v816 = vshrl.u32 %v815, 7
    %v817 = vsub.s32 0, %v816
    %v818 = vrot.slane %v808, %v817
    %v819 = vsel %vm814, %v818, %v807
    %v820 = vmax.f32 %v819, 0.0
    %v821 = vmul.f32 %v766, %v820
    %v822 = vmul.f32 %v820, %v820
    %vm823 = vcmask 1041408
    %v824 = vsel %vm823, %v822, 0.0
    %825 = vadd.xlane.f32.xlu0 %v824
    %v826 = vpop.xlane.xlu0 %825
    %v827 = vmul.f32 %v766, %v766
    %v828 = vsel %vm823, %v827, 0.0
    %829 = vadd.xlane.f32.xlu0 %v828
    %v830 = vpop.xlane.xlu0 %829
    %v831 = vmul.f32 %v821, %v821
    %v832 = vsel %vm823, %v831, 0.0
    %833 = vadd.xlane.f32.xlu0 %v832
    %v834 = vpop.xlane.xlu0 %833
    %v835 = vmax.f32 %v834, 1e-24
    %v836 = vrsqrt.pop %v835
    %v837 = vmul.f32 %v821, %v836
    %v838 = vrsqrt.pop %v826
    %v839 = vmul.f32 %v826, %v838
    %vm840 = vcmp.eq.f32.partialorder %v826, inf
    %v841 = vsel %vm840, %v826, %v839
    %vm842 = vcmp.eq.f32.partialorder %v826, 0.0
    %v843 = vand.u32 %v826, 2147483648
    %v844 = vsel %vm842, %v843, %v841
    %v845 = vrsqrt.pop %v830
    %v846 = vmul.f32 %v830, %v845
    %vm847 = vcmp.eq.f32.partialorder %v830, inf
    %v848 = vsel %vm847, %v830, %v846
    %vm849 = vcmp.eq.f32.partialorder %v830, 0.0
    %v850 = vand.u32 %v830, 2147483648
    %v851 = vsel %vm849, %v850, %v848
    %v852 = vrsqrt.pop %v834
    %v853 = vmul.f32 %v834, %v852
    %vm854 = vcmp.eq.f32.partialorder %v834, inf
    %v855 = vsel %vm854, %v834, %v853
    %vm856 = vcmp.eq.f32.partialorder %v834, 0.0
    %v857 = vand.u32 %v834, 2147483648
    %v858 = vsel %vm856, %v857, %v855
    %v859 = vmul.f32 %v858, %v836
    %v860 = vlaneseq
    %v861 = vand.u32 %v860, 127
    %vm862 = vcmp.eq.s32.totalorder %v861, 0
    %vm863 = vcmp.eq.s32.totalorder %v861, 1
    %vm864 = vcmp.eq.s32.totalorder %v861, 2
    %v865 = vsel %vm864, %v859, 0.0
    %v866 = vsel %vm863, %v851, %v865
    %v867 = vsel %vm862, %v844, %v866
    %868 = vst [vmem:[#allocation5] sm:$0x3] %v837
    %869 = vst [vmem:[%s6] sm:$0x3] %v867
    // Predicated region
    $region26: #{conditional_simnet_forward.1} parent=1 // pred_check
      _
    $region27: #{conditional_simnet_forward.1} parent=1 // pred_check_branch
      %871 = sbr.rel (0) target = $region29
    $region28: #{conditional_simnet_forward.1} parent=1 // pred_region
      %s873 = ssub.s32 32, 32
      %874 = vsyncadd [#allocation4], %s873
      %s876 = sshll.u32 [#allocation5], 4
      %s877 = int_to_ptr.vmem [resolvable:$true] %s876
      %879 = dma.vmem_to_hbm [thread:$0]  %s877, 32, %s5, [#allocation4]
    $region29: #{conditional_simnet_forward.1} parent=1 // pred_fallthru
      _
    // Predicated region
    $region30: #{conditional_simnet_forward.1} parent=1 // pred_check
      _
    $region31: #{conditional_simnet_forward.1} parent=1 // pred_check_branch
      %881 = sbr.rel (0) target = $region33
    $region32: #{conditional_simnet_forward.1} parent=1 // pred_region
      _
    $region33: #{conditional_simnet_forward.1} parent=1 // pred_fallthru
      _
    // Predicated region
    $region34: #{conditional_simnet_forward.1} parent=1 // pred_check
      _
    $region35: #{conditional_simnet_forward.1} parent=1 // pred_check_branch
      %883 = sbr.rel (0) target = $region37
    $region36: #{conditional_simnet_forward.1} parent=1 // pred_region
      %884 = dma.done [#allocation4], 32
    $region37: #{conditional_simnet_forward.1} parent=1 // pred_fallthru
      _
    // Predicated region
    $region38: #{conditional_simnet_forward.1} parent=1 // pred_check
      _
    $region39: #{conditional_simnet_forward.1} parent=1 // pred_check_branch
      %886 = sbr.rel (0) target = $region41
    $region40: #{conditional_simnet_forward.1} parent=1 // pred_region
      _
    $region41: #{conditional_simnet_forward.1} parent=1 // pred_fallthru
      _
    %887 = vsyncpa [#allocation3], 1
    %888 = vsyncpa [#allocation4], 1

</llo_original>
